<compile_context>
chip_gen: v7x
topology: tpu7x:2x2x1
jax: 0.10.0
libtpu: 0.0.40
codegen_flags: <defaults>
</compile_context>

<pallas_src>
import jax
import jax.numpy as jnp
from jax import lax
from jax.experimental import pallas as pl
from jax.experimental.pallas import tpu as pltpu


def _round_up(x, m):
    return ((x + m - 1) // m) * m


def _round_down(x, m):
    return (x // m) * m


def _make_logreg_kernel(d_total, td):
    """Kernel over grid (batch_tiles, feature_tiles); feature axis is a reduction."""
    needs_mask = (d_total % td) != 0  # static: last feature block is boundary-padded

    def kernel(x_ref, w_ref, b_ref, o_ref, acc_ref):
        # x_ref: (tb, td) VMEM   w_ref: (1, td) VMEM   b_ref: (1, 1) SMEM
        # o_ref: (1, tb) VMEM (resident across the feature axis)
        # acc_ref: (1, tb) f32 VMEM scratch
        j = pl.program_id(1)

        @pl.when(j == 0)
        def _():
            acc_ref[...] = jnp.zeros_like(acc_ref)

        x = x_ref[...]
        w = w_ref[...]
        if needs_mask:
            # Zero feature columns past D in the boundary-padded last block so garbage
            # (possibly inf/NaN) in the padding cannot contaminate the reduction.
            base = j * td
            col_x = base + lax.broadcasted_iota(jnp.int32, x.shape, 1)
            col_w = base + lax.broadcasted_iota(jnp.int32, w.shape, 1)
            x = jnp.where(col_x < d_total, x, jnp.zeros_like(x))
            w = jnp.where(col_w < d_total, w, jnp.zeros_like(w))

        # N=1 GEMV on the MXU: (1, td) . (tb, td)^T -> (1, tb), f32 accumulation,
        # lane-dense output by construction (no relayout, XLU stays idle).
        acc_ref[...] += lax.dot_general(
            w, x, (((1,), (1,)), ((), ())),
            preferred_element_type=jnp.float32)

        @pl.when(j == pl.num_programs(1) - 1)
        def _():
            z = acc_ref[...] + b_ref[0, 0]
            # Exact sigmoid; exp runs on the EUP and this loop is HBM-bound anyway.
            o_ref[...] = (1.0 / (1.0 + jnp.exp(-z))).astype(o_ref.dtype)

    return kernel


def logistic_regression(x, w, b, *, block_batch=None, block_features=None,
                        compute_dtype=jnp.bfloat16):
    """Forward pass of Linear(D, 1) + Sigmoid.

    x: (B, D), w: (1, D) (PyTorch nn.Linear weight layout), b: scalar / (1,) / (1, 1).
    Returns (B, 1) float32, matching the PyTorch module's output layout.
    """
    B, D = x.shape
    w = jnp.asarray(w).reshape(1, D)
    b = jnp.asarray(b, jnp.float32).reshape(1, 1)

    if compute_dtype is not None:
        x = x.astype(compute_dtype)
        w = w.astype(compute_dtype)
    itemsize = jnp.dtype(x.dtype).itemsize

    # ---- generation-aware VMEM budgets (v5e/v6e: 128 MiB physical, v7x: 64 MiB/TC) --
    try:
        info = pltpu.get_tpu_info()
        vmem_cap = getattr(info, "vmem_capacity_bytes", 64 * 1024 * 1024)
    except Exception:  # e.g. non-TPU / interpret environments
        vmem_cap = 64 * 1024 * 1024
    if vmem_cap >= 100 * 1024 * 1024:        # v5e / v6e
        x_budget = 16 * 1024 * 1024          # per x buffer (x is double-buffered)
        vmem_limit = 64 * 1024 * 1024
    else:                                    # v7x (64 MiB per TensorCore)
        x_budget = 12 * 1024 * 1024
        vmem_limit = 48 * 1024 * 1024

    # Rows per tile that fit the budget with the whole feature dim resident.
    rows_full_d = _round_down(x_budget // (2 * D * itemsize), 128)

    # ---- batch tile: lanes of the (1, tb) output block -> multiple of 128 ----------
    if block_batch is None:
        block_batch = min(32768, max(128, rows_full_d))
    tb = min(_round_up(block_batch, 128),
             _round_up(pl.cdiv(B, 2), 128),   # >= 2 tiles so v7x dual-TC gets work
             _round_up(B, 128))
    tb = max(tb, 128)

    # ---- feature tile ----------------------------------------------------------------
    if block_features is not None:
        td = min(_round_up(block_features, 128), _round_up(D, 128))
    elif rows_full_d >= tb:
        td = D                                # whole feature dim resident per tile
    elif rows_full_d >= 512:
        tb = rows_full_d                      # shrink batch tile a bit, keep D resident
        td = D
    else:
        # Very large D: keep tb rows and stream D over a trailing reduction axis.
        tb = min(tb, 512)
        td = _round_down(x_budget // (2 * tb * itemsize), 128)
        td = max(128, min(td, _round_up(D, 128)))

    num_b = pl.cdiv(B, tb)
    num_d = pl.cdiv(D, td)
    out_cols = num_b * tb                     # pad only the tiny (1, .) output, never x

    kernel = _make_logreg_kernel(D, td)

    out = pl.pallas_call(
        kernel,
        out_shape=jax.ShapeDtypeStruct((1, out_cols), jnp.float32),
        grid=(num_b, num_d),
        in_specs=[
            pl.BlockSpec((tb, td), lambda i, j: (i, j)),          # streamed x tiles
            pl.BlockSpec((1, td), lambda i, j: (0, j)),           # weight row
            pl.BlockSpec(memory_space=pltpu.MemorySpace.SMEM),    # bias scalar
        ],
        out_specs=pl.BlockSpec((1, tb), lambda i, j: (0, i)),     # lane-dense slab
        scratch_shapes=[pltpu.VMEM((1, tb), jnp.float32)],        # f32 accumulator
        compiler_params=pltpu.CompilerParams(
            dimension_semantics=("parallel", "arbitrary"),
            vmem_limit_bytes=vmem_limit,
        ),
    )(x, w, b)

    # Back to the PyTorch (B, 1) layout, dropping batch padding.
    return out.reshape(out_cols, 1)[:B]


if __name__ == "__main__":
    key = jax.random.PRNGKey(0)
    k_x, k_w, k_b, k_x2, k_w2 = jax.random.split(key, 5)

    # Small shapes; batch not a multiple of the tile exercises the boundary-block path.
    batch, in_features = 250, 32

    # nn.Linear default init: U(-1/sqrt(in_features), 1/sqrt(in_features)).
    bound = 1.0 / jnp.sqrt(jnp.float32(in_features))
    w = jax.random.uniform(k_w, (1, in_features), jnp.float32, -bound, bound)
    b = jax.random.uniform(k_b, (1,), jnp.float32, -bound, bound)
    x = jax.random.normal(k_x, (batch, in_features), jnp.float32)

    ref = jax.nn.sigmoid(x @ w.T + b)

    # 1) Default path: bf16 streaming of x/w, f32 MXU accumulation, exact sigmoid.
    out = jax.block_until_ready(logistic_regression(x, w, b))
    assert out.shape == (batch, 1)
    assert jnp.allclose(out, ref, atol=2e-2, rtol=2e-2), "bf16 path mismatch vs ref"

    # 2) Full-f32 streaming path (tolerance covers MXU default-precision rounding).
    out_f32 = jax.block_until_ready(
        logistic_regression(x, w, b, compute_dtype=jnp.float32))
    assert jnp.allclose(out_f32, ref, atol=5e-3, rtol=5e-3), "f32 path mismatch vs ref"

    # 3) Feature-reduction path: forced small feature tile (D not a multiple of 128)
    #    exercises the trailing "arbitrary" grid axis + boundary-column masking.
    batch2, d2 = 250, 200
    bound2 = 1.0 / jnp.sqrt(jnp.float32(d2))
    w2 = jax.random.uniform(k_w2, (1, d2), jnp.float32, -bound2, bound2)
    x2 = jax.random.normal(k_x2, (batch2, d2), jnp.float32)
    ref2 = jax.nn.sigmoid(x2 @ w2.T + b)
    out2 = jax.block_until_ready(
        logistic_regression(x2, w2, b, block_features=128,
                            compute_dtype=jnp.float32))
    assert out2.shape == (batch2, 1)
    assert jnp.allclose(out2, ref2, atol=5e-3, rtol=5e-3), "D-split path mismatch"

    print("KERNEL_OK")
</pallas_src>

<mosaic_0001>
module attributes {stable_mosaic.version = 11 : i64} {
  func.func @kernel(%arg0: i32, %arg1: i32, %arg2: memref<128x32xbf16, #tpu.memory_space<vmem>>, %arg3: memref<1x32xbf16, #tpu.memory_space<vmem>>, %arg4: memref<1x1xf32, #tpu.memory_space<smem>>, %arg5: memref<1x128xf32, #tpu.memory_space<vmem>>, %arg6: memref<1x128xf32, #tpu.memory_space<vmem>>) attributes {dimension_semantics = [#tpu.dimension_semantics<parallel>, #tpu.dimension_semantics<arbitrary>], iteration_bounds = array<i64: 2, 1>, scalar_prefetch = 0 : i64, scratch_operands = 1 : i64, tpu.core_type = #tpu.core_type<tc>, window_params = [{transform_indices = @transform_0, window_bounds = array<i64: 128, 32>}, {transform_indices = @transform_1, window_bounds = array<i64: 1, 32>}, {transform_indices = @transform_2, window_bounds = array<i64: 1, 1>}, {transform_indices = @transform_3, window_bounds = array<i64: 1, 128>}]} {
    %c0_i32 = arith.constant 0 : i32
    %0 = arith.cmpi eq, %arg1, %c0_i32 : i32
    %1 = arith.extui %0 : i1 to i32
    %c0_i32_0 = arith.constant 0 : i32
    %2 = arith.cmpi ne, %1, %c0_i32_0 : i32
    scf.if %2 {
      %cst_10 = arith.constant 0.000000e+00 : f32
      %12 = vector.broadcast %cst_10 : f32 to vector<1x128xf32>
      %c0_11 = arith.constant 0 : index
      %c0_12 = arith.constant 0 : index
      %13 = vector.load %arg6[%c0_11, %c0_12] : memref<1x128xf32, #tpu.memory_space<vmem>>, vector<1x128xf32>
      tpu.vector_store %arg6[%c0_11, %c0_12], %12 {strides = array<i32>} : memref<1x128xf32, #tpu.memory_space<vmem>>, vector<1x128xf32>,
    } else {
    }
    %c0 = arith.constant 0 : index
    %c0_1 = arith.constant 0 : index
    %3 = vector.load %arg2[%c0, %c0_1] : memref<128x32xbf16, #tpu.memory_space<vmem>>, vector<128x32xbf16>
    %c0_2 = arith.constant 0 : index
    %c0_3 = arith.constant 0 : index
    %4 = vector.load %arg3[%c0_2, %c0_3] : memref<1x32xbf16, #tpu.memory_space<vmem>>, vector<1x32xbf16>
    %c0_4 = arith.constant 0 : index
    %c0_5 = arith.constant 0 : index
    %5 = vector.load %arg6[%c0_4, %c0_5] : memref<1x128xf32, #tpu.memory_space<vmem>>, vector<1x128xf32>
    %cst = arith.constant dense<0.000000e+00> : vector<1x128xf32>
    %6 = tpu.matmul %4, %3, %cst {dimension_numbers = #tpu.dot_dimension_numbers<[1], [1], [0], [0], [0, 0, 1, 0], [], []>} : vector<1x32xbf16>, vector<128x32xbf16>, vector<1x128xf32> -> vector<1x128xf32>
    %7 = arith.addf %5, %6 : vector<1x128xf32>
    %c0_6 = arith.constant 0 : index
    %c0_7 = arith.constant 0 : index
    %8 = vector.load %arg6[%c0_6, %c0_7] : memref<1x128xf32, #tpu.memory_space<vmem>>, vector<1x128xf32>
    tpu.vector_store %arg6[%c0_6, %c0_7], %7 {strides = array<i32>} : memref<1x128xf32, #tpu.memory_space<vmem>>, vector<1x128xf32>,
    %c0_i32_8 = arith.constant 0 : i32
    %9 = arith.cmpi eq, %arg1, %c0_i32_8 : i32
    %10 = arith.extui %9 : i1 to i32
    %c0_i32_9 = arith.constant 0 : i32
    %11 = arith.cmpi ne, %10, %c0_i32_9 : i32
    scf.if %11 {
      %c0_10 = arith.constant 0 : index
      %c0_11 = arith.constant 0 : index
      %12 = vector.load %arg6[%c0_10, %c0_11] : memref<1x128xf32, #tpu.memory_space<vmem>>, vector<1x128xf32>
      %c0_12 = arith.constant 0 : index
      %c0_13 = arith.constant 0 : index
      %13 = memref.load %arg4[%c0_12, %c0_13] : memref<1x1xf32, #tpu.memory_space<smem>>
      %14 = vector.broadcast %13 : f32 to vector<1x128xf32>
      %15 = arith.addf %12, %14 : vector<1x128xf32>
      %cst_14 = arith.constant 0.000000e+00 : f32
      %16 = vector.broadcast %cst_14 : f32 to vector<1x128xf32>
      %17 = arith.subf %16, %15 : vector<1x128xf32>
      %18 = math.exp %17 : vector<1x128xf32>
      %cst_15 = arith.constant 1.000000e+00 : f32
      %19 = vector.broadcast %cst_15 : f32 to vector<1x128xf32>
      %20 = arith.addf %19, %18 : vector<1x128xf32>
      %cst_16 = arith.constant 1.000000e+00 : f32
      %21 = vector.broadcast %cst_16 : f32 to vector<1x128xf32>
      %22 = arith.divf %21, %20 : vector<1x128xf32>
      %c0_17 = arith.constant 0 : index
      %c0_18 = arith.constant 0 : index
      %23 = vector.load %arg5[%c0_17, %c0_18] : memref<1x128xf32, #tpu.memory_space<vmem>>, vector<1x128xf32>
      tpu.vector_store %arg5[%c0_17, %c0_18], %22 {strides = array<i32>} : memref<1x128xf32, #tpu.memory_space<vmem>>, vector<1x128xf32>,
    } else {
    }
    return
  }
  func.func @transform_0(%arg0: i32, %arg1: i32) -> (i32, i32) {
    %c0_i32 = arith.constant 0 : i32
    return %arg0, %arg1 : i32, i32
  }
  func.func @transform_1(%arg0: i32, %arg1: i32) -> (i32, i32) {
    %c0_i32 = arith.constant 0 : i32
    %c0_i32_0 = arith.constant 0 : i32
    return %c0_i32, %arg1 : i32, i32
  }
  func.func @transform_2(%arg0: i32, %arg1: i32) -> (i32, i32) {
    %c0_i32 = arith.constant 0 : i32
    %c0_i32_0 = arith.constant 0 : i32
    %c0_i32_1 = arith.constant 0 : i32
    return %c0_i32, %c0_i32_0 : i32, i32
  }
  func.func @transform_3(%arg0: i32, %arg1: i32) -> (i32, i32) {
    %c0_i32 = arith.constant 0 : i32
    %c0_i32_0 = arith.constant 0 : i32
    return %c0_i32, %arg0 : i32, i32
  }
}

</mosaic_0001>

<llo_original>
// kernel: tpu_custom_call.1
$region0: #{tpu_custom_call.1}
  #allocation0 [shape = 'u32[]', space=smem, size = 0x4, offset = 0x4, fixed_abs, tag = 'smem constant byte address 0x4 - core index']
  #allocation1 [shape = 'u32[144,128]{1,0:T(1,128)}', space=vmem, size = 0x12000, scoped, tag = 'internal scratch']
  #allocation2 [shape = 'f32[1,128]{1,0:T(1,128)}', space=vmem, size = 0x200, scoped, tag = 'scratch operand']
  #allocation3 [shape = 'f32[1,1]{1,0:T(1,128)S(6)}', space=smem, size = 0x200, scoped, tag = 'scoped memory for tpu_custom_call.1']
  %s0 = inlined_call_operand.vmem [shape: bf16[250,32], index: 0, kind: input, shape index: {}]
  %s1 = inlined_call_operand.vmem [shape: bf16[1,32], index: 1, kind: input, shape index: {}]
  %s2 = inlined_call_operand.<no memory space> [shape: f32[1,1], index: 2, kind: input, shape index: {}]
  %s3 = inlined_call_operand.hbm [shape: f32[1,256], index: 3, kind: output, shape index: {}]
  %s4 = sld [smem:[#allocation0]]
  $region53: #{tpu_custom_call.1} parent=0
    _
  %s6 = ssub.s32 1, %s4
  %s7 = scalar_select 0, %s6, %s4
  %8 = sst [smem:[#allocation3]] %s2
  $region1: #{tpu_custom_call.1} parent=0
    #allocation4 [shape = 'u8[1024]{0}', space=vmem, size = 0x400, scoped, tag = 'output window, operand 0']
    #allocation5 [shape = 's32[2]{0}', space=sflag, size = 0x8, scoped, tag = 'scoped memory for tpu_custom_call.1']
    %9 = vsyncpa [#allocation5], 0
    %s10 = scalar_lea.sflag [#allocation5], 1
    %11 = vsyncpa %s10, 0
    loop: start=0, step=1, limit=4
    $region2: #{tpu_custom_call.1} parent=1 // loop_pre_header
      _
    $region3: #{tpu_custom_call.1} parent=1 // loop_header
      %s13 = sphi 0, %s17
      %p14 = scmp.ge.s32.totalorder %s13, 4
      %s20 = sphi 0, %s32
      %s21 = sphi 0, %s28
      %s22 = sphi 0, %s20
      %s23 = sphi 0, %s21
      %s24 = sphi 0, %s22
      %s25 = sphi 0, %s23
      %s37 = sphi 0, %s39
      %s40 = sphi 0, %s37
      %s41 = sphi 0, %s40
      %s57 = sphi 0, %s41
      %s63 = sphi 0, %s65
      %s66 = sphi 0, %s63
      %s67 = sphi 0, %s66
      %s83 = sphi 0, %s67
      %s87 = sphi 0, %s87
      %s89 = sphi 0, %s87
      %s90 = sphi 0, %s89
      %s104 = sphi 0, %s90
      %s110 = sphi 0, %s112
      %s113 = sphi 0, %s110
      %s114 = sphi 0, %s113
      %s130 = sphi 0, %s114
    $region4: #{tpu_custom_call.1} parent=1 // loop_header_branch
      %16 = sbr.rel (%p14) target = $region8
    $region5: #{tpu_custom_call.1} parent=1 // loop_body
      %s18 = ssub.s32 %s13, 1
      %s19 = ssub.s32 %s13, 2
      %s26 = sadd.s32 1, %s21
      %p27 = scmp.ge.s32.totalorder %s26, 1
      %s28 = scalar_select %p27, 0, %s26
      %s29 = sadd.s32 1, %s20
      %s30 = scalar_select %p27, %s29, %s20
      %p31 = scmp.ge.s32.totalorder %s30, 2
      %s32 = scalar_select %p31, 0, %s30
      %s33 = ssub.s32 %s20, %s32
      %s34 = ssub.s32 %s21, %s28
      %s35 = sor.u32 %s33, %s34
      %p36 = scmp.eq.s32.totalorder %s35, 0
      %s38 = sadd.s32 %s37, 1
      %s39 = scalar_select %p36, %s37, %s38
      %p42 = pneg %p36
      %p43 = scmp.eq.s32.totalorder %s13, 1
      %p44 = por %p42, %p43
      %p45 = scmp.ne.s32.totalorder %s37, %s40
      %p46 = scmp.eq.s32.totalorder %s13, 0
      %p47 = por %p45, %p46
      %p48 = scmp.ne.s32.totalorder %s37, %s40
      %p49 = scmp.eq.s32.totalorder %s18, 1
      %p50 = por %p48, %p49
      %p51 = scmp.ne.s32.totalorder %s40, %s41
      %p52 = scmp.eq.s32.totalorder %s18, 0
      %p53 = por %p51, %p52
      %p54 = scmp.ne.s32.totalorder %s40, %s41
      %p55 = scmp.eq.s32.totalorder %s19, 1
      %p56 = por %p54, %p55
      %p58 = scmp.ne.s32.totalorder %s41, %s57
      %p59 = scmp.eq.s32.totalorder %s19, 0
      %p60 = por %p58, %p59
      %s61 = ssub.s32 %s21, %s28
      %p62 = scmp.eq.s32.totalorder %s61, 0
      %s64 = sadd.s32 %s63, 1
      %s65 = scalar_select %p62, %s63, %s64
      %p68 = pneg %p62
      %p69 = scmp.eq.s32.totalorder %s13, 1
      %p70 = por %p68, %p69
      %p71 = scmp.ne.s32.totalorder %s63, %s66
      %p72 = scmp.eq.s32.totalorder %s13, 0
      %p73 = por %p71, %p72
      %p74 = scmp.ne.s32.totalorder %s63, %s66
      %p75 = scmp.eq.s32.totalorder %s18, 1
      %p76 = por %p74, %p75
      %p77 = scmp.ne.s32.totalorder %s66, %s67
      %p78 = scmp.eq.s32.totalorder %s18, 0
      %p79 = por %p77, %p78
      %p80 = scmp.ne.s32.totalorder %s66, %s67
      %p81 = scmp.eq.s32.totalorder %s19, 1
      %p82 = por %p80, %p81
      %p84 = scmp.ne.s32.totalorder %s67, %s83
      %p85 = scmp.eq.s32.totalorder %s19, 0
      %p86 = por %p84, %p85
      %s88 = sadd.s32 %s87, 1
      %p91 = scmp.eq.s32.totalorder %s13, 1
      %p92 = scmp.ne.s32.totalorder %s87, %s89
      %p93 = scmp.eq.s32.totalorder %s13, 0
      %p94 = por %p92, %p93
      %p95 = scmp.ne.s32.totalorder %s87, %s89
      %p96 = scmp.eq.s32.totalorder %s18, 1
      %p97 = por %p95, %p96
      %p98 = scmp.ne.s32.totalorder %s89, %s90
      %p99 = scmp.eq.s32.totalorder %s18, 0
      %p100 = por %p98, %p99
      %p101 = scmp.ne.s32.totalorder %s89, %s90
      %p102 = scmp.eq.s32.totalorder %s19, 1
      %p103 = por %p101, %p102
      %p105 = scmp.ne.s32.totalorder %s90, %s104
      %p106 = scmp.eq.s32.totalorder %s19, 0
      %p107 = por %p105, %p106
      %s108 = ssub.s32 %s20, %s32
      %p109 = scmp.eq.s32.totalorder %s108, 0
      %s111 = sadd.s32 %s110, 1
      %s112 = scalar_select %p109, %s110, %s111
      %p115 = pneg %p109
      %p116 = scmp.eq.s32.totalorder %s13, 1
      %p117 = por %p115, %p116
      %p118 = scmp.ne.s32.totalorder %s110, %s113
      %p119 = scmp.eq.s32.totalorder %s13, 0
      %p120 = por %p118, %p119
      %p121 = scmp.ne.s32.totalorder %s110, %s113
      %p122 = scmp.eq.s32.totalorder %s18, 1
      %p123 = por %p121, %p122
      %p124 = scmp.ne.s32.totalorder %s113, %s114
      %p125 = scmp.eq.s32.totalorder %s18, 0
      %p126 = por %p124, %p125
      %p127 = scmp.ne.s32.totalorder %s113, %s114
      %p128 = scmp.eq.s32.totalorder %s19, 1
      %p129 = por %p127, %p128
      %p131 = scmp.ne.s32.totalorder %s114, %s130
      %p132 = scmp.eq.s32.totalorder %s19, 0
      %p133 = por %p131, %p132
      %p134 = scmp.le.s32.totalorder 1, %s13
      %p135 = scmp.lt.s32.totalorder %s13, 3
      %p136 = pnand %p134, %p135
      %p137 = pneg %p136
      // Predicated region
      $region9: #{tpu_custom_call.1} parent=5 // pred_check
        _
      $region10: #{tpu_custom_call.1} parent=5 // pred_check_branch
        %139 = sbr.rel (%p136) target = $region12
      $region11: #{tpu_custom_call.1} parent=5 // pred_region
        %s140 = ssub.s32 %s13, 1
        // Predicated region
        $region13: #{tpu_custom_call.1} parent=11 // pred_check
          %p141 = pneg %p79
        $region14: #{tpu_custom_call.1} parent=11 // pred_check_branch
          %143 = sbr.rel (%p141) target = $region16
        $region15: #{tpu_custom_call.1} parent=11 // pred_region
          %p144 = scmp.lt.s32.totalorder %s23, 0
          %s145 = scalar_select %p144, %s23, 0
          %s146 = scalar_lea.vmem %s1, %s145
        $region16: #{tpu_custom_call.1} parent=11 // pred_fallthru
          _
        // Predicated region
        $region17: #{tpu_custom_call.1} parent=11 // pred_check
          %p147 = pneg %p100
        $region18: #{tpu_custom_call.1} parent=11 // pred_check_branch
          %149 = sbr.rel (%p147) target = $region20
        $region19: #{tpu_custom_call.1} parent=11 // pred_region
          _
        $region20: #{tpu_custom_call.1} parent=11 // pred_fallthru
          _
      $region12: #{tpu_custom_call.1} parent=5 // pred_fallthru
        _
      %p150 = scmp.lt.s32.totalorder %s13, 2
      // Predicated region
      $region21: #{tpu_custom_call.1} parent=5 // pred_check
        %p151 = pneg %p150
      $region22: #{tpu_custom_call.1} parent=5 // pred_check_branch
        %153 = sbr.rel (%p151) target = $region24
      $region23: #{tpu_custom_call.1} parent=5 // pred_region
        // Predicated region
        $region25: #{tpu_custom_call.1} parent=23 // pred_check
          %p154 = pneg %p47
        $region26: #{tpu_custom_call.1} parent=23 // pred_check_branch
          %156 = sbr.rel (%p154) target = $region28
        $region27: #{tpu_custom_call.1} parent=23 // pred_region
          %s157 = smul.u32 16, %s20
          %p158 = scmp.lt.s32.totalorder %s157, 31
          %s159 = scalar_select %p158, %s157, 31
          %p160 = scmp.lt.s32.totalorder %s21, 0
          %s161 = scalar_select %p160, %s21, 0
          %s162 = sadd.s32 %s161, %s159
          %s163 = smul.addr %s162, 4
          %s164 = scalar_lea.vmem %s0, %s163
          %s165 = smul.u32 16, %s20
        $region28: #{tpu_custom_call.1} parent=23 // pred_fallthru
          _
      $region24: #{tpu_custom_call.1} parent=5 // pred_fallthru
        _
      %p166 = scmp.le.s32.totalorder 1, %s13
      %p167 = scmp.lt.s32.totalorder %s13, 3
      %p168 = pnand %p166, %p167
      %p169 = pneg %p168
      // Predicated region
      $region29: #{tpu_custom_call.1} parent=5 // pred_check
        _
      $region30: #{tpu_custom_call.1} parent=5 // pred_check_branch
        %171 = sbr.rel (%p168) target = $region32
      $region31: #{tpu_custom_call.1} parent=5 // pred_region
        %s172 = ssub.s32 %s13, 1
        %s173 = smul.u32 16, %s22
        %p174 = scmp.lt.s32.totalorder %s173, 31
        %s175 = scalar_select %p174, %s173, 31
        %p176 = scmp.lt.s32.totalorder %s23, 0
        %s177 = scalar_select %p176, %s23, 0
        %s178 = sadd.s32 %s177, %s175
        %s179 = smul.addr %s178, 4
        %s180 = scalar_lea.vmem %s0, %s179
        %p181 = pneg %p53
        %p182 = pneg %p50
        %p183 = scmp.lt.s32.totalorder %s23, 0
        %s184 = scalar_select %p183, %s23, 0
        %s185 = scalar_lea.vmem %s1, %s184
        %p186 = pneg %p79
        %p187 = pneg %p76
        %p188 = pneg %p100
        %p189 = pneg %p97
        %p190 = pneg %p126
        %p191 = pneg %p123
        %s192 = sand.u32 %s113, 1
        %s193 = scalar_lea.sflag [#allocation5], %s192
        %s194 = sand.u32 %s113, 1
        %s195 = scalar_lea.vmem [#allocation4], %s194
        %s196 = smul.u32 16, %s22
        %p197 = scmp.lt.s32.totalorder %s196, 31
        %s198 = scalar_select %p197, %s196, 31
        %p199 = scmp.lt.s32.totalorder %s23, 0
        %s200 = scalar_select %p199, %s23, 0
        %s201 = sadd.s32 %s200, %s198
        %s202 = smul.addr %s201, 4
        %s203 = scalar_lea.vmem %s0, %s202
        %s204 = smul.u32 16, %s22
        %p205 = scmp.lt.s32.totalorder %s23, 0
        %s206 = scalar_select %p205, %s23, 0
        %s207 = scalar_lea.vmem %s1, %s206
        %p209 = scmp.eq.s32.totalorder %s23, 0
        // Predicated region
        $region33: #{tpu_custom_call.1} parent=31 // pred_check
          %p210 = pneg %p209
        $region34: #{tpu_custom_call.1} parent=31 // pred_check_branch
          %212 = sbr.rel (%p210) target = $region36
        $region35: #{tpu_custom_call.1} parent=31 // pred_region
          %213 = vst [vmem:[#allocation2] sm:$0x1] 0.0
        $region36: #{tpu_custom_call.1} parent=31 // pred_fallthru
          _
        %v214 = vld [vmem:[%s203] sm:$0xf]
        %v215 = vld [vmem:[%s203 + $0x4] sm:$0xf]
        %v216 = vld [vmem:[%s203 + $0x8] sm:$0xf]
        %v217 = vld [vmem:[%s203 + $0xc] sm:$0xf]
        %v218 = vld [vmem:[%s203 + $0x10] sm:$0xf]
        %v219 = vld [vmem:[%s203 + $0x14] sm:$0xf]
        %v220 = vld [vmem:[%s203 + $0x18] sm:$0xf]
        %v221 = vld [vmem:[%s203 + $0x1c] sm:$0xf]
        %v222 = vld [vmem:[%s203 + $0x20] sm:$0xf]
        %v223 = vld [vmem:[%s203 + $0x24] sm:$0xf]
        %v224 = vld [vmem:[%s203 + $0x28] sm:$0xf]
        %v225 = vld [vmem:[%s203 + $0x2c] sm:$0xf]
        %v226 = vld [vmem:[%s203 + $0x30] sm:$0xf]
        %v227 = vld [vmem:[%s203 + $0x34] sm:$0xf]
        %v228 = vld [vmem:[%s203 + $0x38] sm:$0xf]
        %v229 = vld [vmem:[%s203 + $0x3c] sm:$0xf]
        %v230 = vld [vmem:[%s207] sm:$0x1]
        %v231 = vld [vmem:[#allocation2] sm:$0x1]
        %v248 = vunpack.c.l.b16 %v214
        %v249 = vunpack.c.l.b16 %v215
        %v250 = vunpack.c.l.b16 %v216
        %v251 = vunpack.c.l.b16 %v217
        %v252 = vunpack.c.l.b16 %v218
        %v253 = vunpack.c.l.b16 %v219
        %v254 = vunpack.c.l.b16 %v220
        %v255 = vunpack.c.l.b16 %v221
        %v256 = vunpack.c.l.b16 %v222
        %v257 = vunpack.c.l.b16 %v223
        %v258 = vunpack.c.l.b16 %v224
        %v259 = vunpack.c.l.b16 %v225
        %v260 = vunpack.c.l.b16 %v226
        %v261 = vunpack.c.l.b16 %v227
        %v262 = vunpack.c.l.b16 %v228
        %v263 = vunpack.c.l.b16 %v229
        %v264 = vpack.c.b16 %v249, %v248
        %v265 = vpack.c.b16 %v251, %v250
        %v266 = vpack.c.b16 %v253, %v252
        %v267 = vpack.c.b16 %v255, %v254
        %v268 = vpack.c.b16 %v257, %v256
        %v269 = vpack.c.b16 %v259, %v258
        %v270 = vpack.c.b16 %v261, %v260
        %v271 = vpack.c.b16 %v263, %v262
        %vm272 = vcmask 261120
        %v274 = vsel %vm272, %v230, 0
        %v277 = vsel %vm272, %v264, 0
        %v280 = vsel %vm272, %v265, 0
        %v283 = vsel %vm272, %v266, 0
        %v286 = vsel %vm272, %v267, 0
        %v289 = vsel %vm272, %v268, 0
        %v292 = vsel %vm272, %v269, 0
        %v295 = vsel %vm272, %v270, 0
        %v298 = vsel %vm272, %v271, 0
        %300 = vmatprep.subr.bf16.mxu0 0
        %301 = vmatpush1.bf16.xpose.msra.mxu0 %v277
        %302 = vmatprep.subr.bf16.mxu0 0
        %303 = vmatpush1.bf16.xpose.msra.mxu0 %v280
        %304 = vmatprep.subr.bf16.mxu0 0
        %305 = vmatpush1.bf16.xpose.msra.mxu0 %v283
        %306 = vmatprep.subr.bf16.mxu0 0
        %307 = vmatpush1.bf16.xpose.msra.mxu0 %v286
        %308 = vmatprep.subr.bf16.mxu0 0
        %309 = vmatpush1.bf16.xpose.msra.mxu0 %v289
        %310 = vmatprep.subr.bf16.mxu0 0
        %311 = vmatpush1.bf16.xpose.msra.mxu0 %v292
        %312 = vmatprep.subr.bf16.mxu0 0
        %313 = vmatpush1.bf16.xpose.msra.mxu0 %v295
        %314 = vmatprep.subr.bf16.mxu0 0
        %315 = vmatpush1.bf16.xpose.msra.mxu0 %v298
        %316 = vmatprep.subr.bf16.mxu0 0
        %317 = vmatpush1.bf16.xpose.msra.mxu0 0
        %318 = vmatprep.subr.bf16.mxu0 0
        %319 = vmatpush1.bf16.xpose.msra.mxu0 0
        %320 = vmatprep.subr.bf16.mxu0 0
        %321 = vmatpush1.bf16.xpose.msra.mxu0 0
        %322 = vmatprep.subr.bf16.mxu0 0
        %323 = vmatpush1.bf16.xpose.msra.mxu0 0
        %324 = vmatprep.subr.bf16.mxu0 0
        %325 = vmatpush1.bf16.xpose.msra.mxu0 0
        %326 = vmatprep.subr.bf16.mxu0 0
        %327 = vmatpush1.bf16.xpose.msra.mxu0 0
        %328 = vmatprep.subr.bf16.mxu0 0
        %329 = vmatpush1.bf16.xpose.msra.mxu0 0
        %330 = vmatprep.subr.bf16.mxu0 0
        %331 = vmatpush1.bf16.xpose.msra.mxu0 0
        %332 = vmatprep.mubr.bf16.mxu0 0
        %333 = vmatmul.mubr.bf16.gmra.mrb[0].mxu0 %v274
        %v334 = vpop.f32.mrb[0].mxu0
        %v335 = vadd.f32 0.0, %v334
        %v336 = vpop.f32.mrb[0].mxu0
        %v337 = vpop.f32.mrb[0].mxu0
        %v338 = vpop.f32.mrb[0].mxu0
        %339 = vdwg.mxu0
        %v340 = vadd.f32 %v231, %v335
        %341 = vst [vmem:[#allocation2] sm:$0x1] %v340
        // Predicated region
        $region37: #{tpu_custom_call.1} parent=31 // pred_check
          %p342 = pneg %p209
        $region38: #{tpu_custom_call.1} parent=31 // pred_check_branch
          %344 = sbr.rel (%p342) target = $region40
        $region39: #{tpu_custom_call.1} parent=31 // pred_region
          %v345 = vld [vmem:[#allocation2] sm:$0x1]
          %s346 = sld [smem:[#allocation3]]
          %v347 = vstv %s346
          %v348 = vadd.f32 %v345, %v347
          %v349 = vsub.f32 0.0, %v348
          %v350 = vmul.f32 %v349, 1.442695
          %v351 = vpow.pop %v350
          %v352 = vadd.f32 %v351, 1.0
          %v353 = vrcp.pop %v352
          %v354 = vmul.f32 1.0, %v353
          %355 = vst [vmem:[%s195] sm:$0x1] %v354
        $region40: #{tpu_custom_call.1} parent=31 // pred_fallthru
          _
        %s356 = sand.u32 %s113, 1
        %s357 = scalar_lea.sflag [#allocation5], %s356
        %s358 = sand.u32 %s113, 1
        %s359 = scalar_lea.vmem [#allocation4], %s358
        // Predicated region
        $region41: #{tpu_custom_call.1} parent=31 // pred_check
          %p360 = pneg %p123
        $region42: #{tpu_custom_call.1} parent=31 // pred_check_branch
          %362 = sbr.rel (%p360) target = $region44
        $region43: #{tpu_custom_call.1} parent=31 // pred_region
          %s364 = ssub.s32 16, 16
          %365 = vsyncadd %s357, %s364
          %s366 = smul.addr %s22, 16
          %s367 = scalar_lea.hbm %s3, %s366
          %s369 = sshll.u32 %s359, 4
          %s370 = int_to_ptr.vmem [resolvable:$true] %s369
          %372 = dma.vmem_to_hbm [thread:$0]  %s370, 16, %s367, %s357
        $region44: #{tpu_custom_call.1} parent=31 // pred_fallthru
          _
      $region32: #{tpu_custom_call.1} parent=5 // pred_fallthru
        _
      %p373 = scmp.le.s32.totalorder 2, %s13
      // Predicated region
      $region45: #{tpu_custom_call.1} parent=5 // pred_check
        %p374 = pneg %p373
      $region46: #{tpu_custom_call.1} parent=5 // pred_check_branch
        %376 = sbr.rel (%p374) target = $region48
      $region47: #{tpu_custom_call.1} parent=5 // pred_region
        %s377 = ssub.s32 %s13, 2
        // Predicated region
        $region49: #{tpu_custom_call.1} parent=47 // pred_check
          %p378 = pneg %p129
        $region50: #{tpu_custom_call.1} parent=47 // pred_check_branch
          %380 = sbr.rel (%p378) target = $region52
        $region51: #{tpu_custom_call.1} parent=47 // pred_region
          %s381 = sand.u32 %s114, 1
          %s382 = scalar_lea.sflag [#allocation5], %s381
          %s383 = sand.u32 %s114, 1
          %s384 = scalar_lea.vmem [#allocation4], %s383
          %385 = dma.done %s382, 16
        $region52: #{tpu_custom_call.1} parent=47 // pred_fallthru
          _
      $region48: #{tpu_custom_call.1} parent=5 // pred_fallthru
        _
    $region6: #{tpu_custom_call.1} parent=1 // loop_footer
      %s17 = sadd.s32 1, %s13
    $region7: #{tpu_custom_call.1} parent=1 // loop_footer_branch
      %12 = sbr.rel target = $region3
    $region8: #{tpu_custom_call.1} parent=1 // loop_exit
      _
    %386 = vsyncpa [#allocation5], 1
    %s387 = scalar_lea.sflag [#allocation5], 1
    %388 = vsyncpa %s387, 1

</llo_original>
